<compile_context>
chip_gen: v6e
topology: v6e:2x2x1
jax: 0.10.0
libtpu: 0.0.40
codegen_flags: <defaults>
</compile_context>

<pallas_src>
import functools

import jax
import jax.numpy as jnp
from jax.experimental import pallas as pl
from jax.experimental.pallas import tpu as pltpu


_DEFAULT_LANES = 512          # pad-path lane width (multiple of 128)
_MAX_LANES = 1024             # widest lane-dense slab searched for
_MIN_PALLAS_BYTES = 1 << 20   # below this, XLA fused elementwise wins


def _round_up(a, b):
    return -(-a // b) * b


def _device_tuning():
    """Per-generation (block_bytes, min_grid_tiles, vmem_limit_bytes)."""
    try:
        kind = jax.devices()[0].device_kind.lower()
    except Exception:
        kind = ""
    if "v5" in kind:
        # v5e scoped-VMEM default is only 16 MiB: keep the 2(in+out) x
        # 2(double-buffer) pipeline footprint ~8 MiB, raise limit modestly.
        return (2 << 20), 1, (24 << 20)
    if "v7" in kind or "7x" in kind:
        # v7x: 3.2 TB/s HBM -> big blocks amortize the ~0.35us step cost;
        # 2 TensorCores -> need >= 2 grid tiles; 64 MiB physical VMEM.
        return (8 << 20), 2, (48 << 20)
    # v6e (and default): ~1.4 TB/s HBM, 32 MiB scoped default, 1 TC.
    return (4 << 20), 1, (32 << 20)


def _act_quant_kernel(x_ref, o_ref, *, scale, inv_scale):
    # output = clamp(x * 0.1, 0, 1); output = round(output * scale) / scale
    x = x_ref[...]
    # f32 constants promote bf16/fp16 inputs to f32 (matches torch f32 math).
    y = jnp.clip(x * jnp.float32(0.1), 0.0, 1.0)
    # torch.round and jnp.round both round-half-to-even -> exact match.
    y = jnp.round(y * jnp.float32(scale))
    o_ref[...] = (y * jnp.float32(inv_scale)).astype(o_ref.dtype)


def _quantize_jnp(x, scale):
    y = jnp.clip(x * jnp.float32(0.1), 0.0, 1.0)
    return (jnp.round(y * jnp.float32(scale)) / jnp.float32(scale)).astype(x.dtype)


def activation_quantize(x, a_bits, *, min_pallas_bytes=_MIN_PALLAS_BYTES):
    """Forward pass of DoReFa activation_quantize.

    x: float array, any shape (NCHW assumed for conv activations).
    a_bits: int bit-width. 32 -> identity; 1 -> unsupported (assert).
    """
    if a_bits == 32:
        return x
    if a_bits == 1:
        raise AssertionError("Binary quantization is not supported")
    if x.size == 0:
        return x

    scale = float(2 ** a_bits - 1)
    total = int(x.size)
    itemsize = jnp.dtype(x.dtype).itemsize

    # Small-tensor fallback: pallas_call fixed cost + layout plumbing
    # dominates tiny activations; XLA's fused elementwise is as fast.
    if total * itemsize < min_pallas_bytes:
        return _quantize_jnp(x, scale)

    orig_shape = x.shape
    block_bytes, min_tiles, vmem_limit = _device_tuning()

    # Lane-dense slab: widest multiple-of-128 lane width that divides the
    # flat size exactly -> free reshape, no pad / slice HBM passes.
    lanes = 0
    for cand in range(_MAX_LANES, 127, -128):
        if total % cand == 0:
            lanes = cand
            break

    x_flat = x.reshape(-1)
    if lanes:
        rows = total // lanes
        padded = total
    else:
        # Ragged size with no 128-multiple divisor: padded slab fallback
        # (one extra read+write pass; rare for conv activation shapes).
        lanes = _DEFAULT_LANES
        rows = pl.cdiv(total, lanes)
        padded = rows * lanes
        x_flat = jnp.pad(x_flat, (0, padded - total))
    x2d = x_flat.reshape(rows, lanes)

    # Block sizing in bytes so bf16/f32 get comparable DMA sizes; keep rows a
    # multiple of the sublane-packing factor (8 for f32, 16 for bf16/fp16).
    sub = max(8, 32 // itemsize)
    block_rows = max(sub, (block_bytes // (lanes * itemsize)) // sub * sub)
    if block_rows >= rows:
        block_rows = rows  # one block spanning the full row extent (legal)
    # Megacore (v7x): ensure the grid has enough tiles to feed both TCs.
    if min_tiles > 1 and rows >= min_tiles * sub:
        cap = _round_up(pl.cdiv(rows, min_tiles), sub)
        if cap < block_rows:
            block_rows = cap
    grid = (pl.cdiv(rows, block_rows),)

    kernel = functools.partial(
        _act_quant_kernel, scale=scale, inv_scale=1.0 / scale)

    out2d = pl.pallas_call(
        kernel,
        out_shape=jax.ShapeDtypeStruct(x2d.shape, x2d.dtype),
        grid_spec=pl.GridSpec(
            grid=grid,
            in_specs=[pl.BlockSpec((block_rows, lanes), lambda i: (i, 0))],
            out_specs=pl.BlockSpec((block_rows, lanes), lambda i: (i, 0)),
        ),
        compiler_params=pltpu.CompilerParams(
            dimension_semantics=("parallel",),
            vmem_limit_bytes=vmem_limit,
        ),
        cost_estimate=pl.CostEstimate(
            flops=5 * padded,
            transcendentals=0,
            bytes_accessed=2 * padded * itemsize,
        ),
    )(x2d)

    out_flat = out2d.reshape(-1)
    if padded != total:
        out_flat = out_flat[:total]
    return out_flat.reshape(orig_shape)


if __name__ == "__main__":
    a_bits = 4
    scale = float(2 ** a_bits - 1)

    def ref_fn(v):
        return jnp.round(jnp.clip(v * 0.1, 0.0, 1.0) * scale) / scale

    # Small NCHW activation, forced through the Pallas path (exercises kernel).
    x = jax.random.normal(jax.random.PRNGKey(0), (2, 4, 16, 16),
                          dtype=jnp.float32) * 5.0
    out = jax.block_until_ready(activation_quantize(x, a_bits,
                                                    min_pallas_bytes=0))
    assert out.shape == x.shape and out.dtype == x.dtype
    assert bool(jnp.allclose(out, ref_fn(x), atol=1e-6)), "mismatch vs reference"

    # Ragged shape (3*7*14*14 = 4116) -> exercises the padded-slab fallback.
    x2 = jax.random.normal(jax.random.PRNGKey(1), (3, 7, 14, 14),
                           dtype=jnp.float32) * 5.0
    out2 = jax.block_until_ready(activation_quantize(x2, a_bits,
                                                     min_pallas_bytes=0))
    assert out2.shape == x2.shape
    assert bool(jnp.allclose(out2, ref_fn(x2), atol=1e-6)), "mismatch (padded)"

    # Medium activation (8*32*32*32 = 1 MiB) -> natural Pallas path, exact
    # (rows, 1024) slab, no pad/slice.
    x3 = jax.random.normal(jax.random.PRNGKey(2), (8, 32, 32, 32),
                           dtype=jnp.float32) * 5.0
    out3 = jax.block_until_ready(activation_quantize(x3, a_bits))
    assert bool(jnp.allclose(out3, ref_fn(x3), atol=1e-6)), "mismatch (medium)"

    # Tiny-tensor jnp fallback path.
    out_small = jax.block_until_ready(activation_quantize(x, a_bits))
    assert bool(jnp.allclose(out_small, ref_fn(x), atol=1e-6)), "mismatch (fallback)"

    # a_bits == 32 path: identity.
    out32 = jax.block_until_ready(activation_quantize(x, 32))
    assert bool(jnp.allclose(out32, x))

    print("KERNEL_OK")
</pallas_src>

<mosaic_0001>
module attributes {stable_mosaic.version = 11 : i64} {
  func.func @_act_quant_kernel(%arg0: i32, %arg1: memref<2x1024xf32, #tpu.memory_space<vmem>>, %arg2: memref<2x1024xf32, #tpu.memory_space<vmem>>) attributes {dimension_semantics = [#tpu.dimension_semantics<parallel>], iteration_bounds = array<i64: 1>, scalar_prefetch = 0 : i64, scratch_operands = 0 : i64, tpu.core_type = #tpu.core_type<tc>, window_params = [{transform_indices = @transform_0, window_bounds = array<i64: 2, 1024>}, {transform_indices = @transform_1, window_bounds = array<i64: 2, 1024>}]} {
    %c0 = arith.constant 0 : index
    %c0_0 = arith.constant 0 : index
    %0 = vector.load %arg1[%c0, %c0_0] : memref<2x1024xf32, #tpu.memory_space<vmem>>, vector<2x1024xf32>
    %cst = arith.constant 1.000000e-01 : f32
    %1 = vector.broadcast %cst : f32 to vector<2x1024xf32>
    %2 = arith.mulf %0, %1 : vector<2x1024xf32>
    %cst_1 = arith.constant 0.000000e+00 : f32
    %cst_2 = arith.constant 1.000000e+00 : f32
    %3 = vector.broadcast %cst_1 : f32 to vector<2x1024xf32>
    %4 = arith.maximumf %3, %2 : vector<2x1024xf32>
    %5 = vector.broadcast %cst_2 : f32 to vector<2x1024xf32>
    %6 = arith.minimumf %5, %4 : vector<2x1024xf32>
    %cst_3 = arith.constant 1.500000e+01 : f32
    %7 = vector.broadcast %cst_3 : f32 to vector<2x1024xf32>
    %8 = arith.mulf %6, %7 : vector<2x1024xf32>
    %9 = math.roundeven %8 : vector<2x1024xf32>
    %cst_4 = arith.constant 0.0666666701 : f32
    %10 = vector.broadcast %cst_4 : f32 to vector<2x1024xf32>
    %11 = arith.mulf %9, %10 : vector<2x1024xf32>
    %c0_5 = arith.constant 0 : index
    %c0_6 = arith.constant 0 : index
    %12 = vector.load %arg2[%c0_5, %c0_6] : memref<2x1024xf32, #tpu.memory_space<vmem>>, vector<2x1024xf32>
    tpu.vector_store %arg2[%c0_5, %c0_6], %11 {strides = array<i32>} : memref<2x1024xf32, #tpu.memory_space<vmem>>, vector<2x1024xf32>,
    return
  }
  func.func @transform_0(%arg0: i32) -> (i32, i32) {
    %c0_i32 = arith.constant 0 : i32
    %c0_i32_0 = arith.constant 0 : i32
    return %arg0, %c0_i32 : i32, i32
  }
  func.func @transform_1(%arg0: i32) -> (i32, i32) {
    %c0_i32 = arith.constant 0 : i32
    %c0_i32_0 = arith.constant 0 : i32
    return %arg0, %c0_i32 : i32, i32
  }
}

</mosaic_0001>

<llo_original>
// kernel: tpu_custom_call.1
$region0: #{tpu_custom_call.1}
  #allocation0 [shape = 'u32[]', space=smem, size = 0x4, offset = 0x4, fixed_abs, tag = 'smem constant byte address 0x4 - core index']
  #allocation1 [shape = 'u32[144,128]{1,0:T(1,128)}', space=vmem, size = 0x12000, scoped, tag = 'internal scratch']
  %s0 = inlined_call_operand.hbm [shape: f32[2,1024], index: 0, kind: input, shape index: {}]
  %s1 = inlined_call_operand.hbm [shape: f32[2,1024], index: 1, kind: output, shape index: {}]
  %s2 = sld [smem:[#allocation0]]
  $region18: #{tpu_custom_call.1} parent=0
    _
  %s4 = ssub.s32 1, %s2
  %s5 = scalar_select 0, %s4, %s2
  $region1: #{tpu_custom_call.1} parent=0
    #allocation2 [shape = 'u8[8192]{0}', space=vmem, size = 0x2000, scoped, tag = 'input window, operand 0, single buffered']
    #allocation3 [shape = 's32[1]{0}', space=sflag, size = 0x4, scoped, tag = 'scoped memory for tpu_custom_call.1']
    #allocation4 [shape = 's32[1]{0}', space=sflag, size = 0x4, scoped, tag = 'scoped memory for tpu_custom_call.1']
    #allocation5 [shape = 'u8[8192]{0}', space=vmem, size = 0x2000, scoped, tag = 'output window, operand 0, single buffered']
    %6 = vsyncpa [#allocation3], 0
    %7 = vsyncpa [#allocation4], 0
    // Predicated region
    $region2: #{tpu_custom_call.1} parent=1 // pred_check
      _
    $region3: #{tpu_custom_call.1} parent=1 // pred_check_branch
      %9 = sbr.rel (0) target = $region5
    $region4: #{tpu_custom_call.1} parent=1 // pred_region
      %s11 = ssub.s32 256, 256
      %12 = vsyncadd [#allocation3], %s11
      %s14 = sshll.u32 [#allocation2], 4
      %s15 = int_to_ptr.vmem [resolvable:$true] %s14
      %17 = dma.hbm_to_vmem [thread:$0]  %s0, 256, %s15, [#allocation3]
    $region5: #{tpu_custom_call.1} parent=1 // pred_fallthru
      _
    // Predicated region
    $region6: #{tpu_custom_call.1} parent=1 // pred_check
      _
    $region7: #{tpu_custom_call.1} parent=1 // pred_check_branch
      %19 = sbr.rel (0) target = $region9
    $region8: #{tpu_custom_call.1} parent=1 // pred_region
      %20 = dma.done [#allocation3], 256
    $region9: #{tpu_custom_call.1} parent=1 // pred_fallthru
      _
    %v21 = vld [vmem:[#allocation2] sm:$0xff]
    %v22 = vld [vmem:[#allocation2 + $0x8] sm:$0xff]
    %v23 = vmul.f32 %v21, 0.1
    %v24 = vmul.f32 %v22, 0.1
    %v25 = vmax.f32 %v23, 0.0
    %v26 = vmax.f32 %v24, 0.0
    %v27 = vmin.f32 %v25, 1.0
    %v28 = vmin.f32 %v26, 1.0
    %v29 = vmul.f32 %v27, 15.0
    %v30 = vmul.f32 %v28, 15.0
    %v31 = vround.ne.pseudo %v29
    %v32 = vround.ne.pseudo %v30
    %v33 = vmul.f32 %v31, 0.06666667
    %v34 = vmul.f32 %v32, 0.06666667
    %35 = vst [vmem:[#allocation5] sm:$0xff] %v33
    %36 = vst [vmem:[#allocation5 + $0x8] sm:$0xff] %v34
    // Predicated region
    $region10: #{tpu_custom_call.1} parent=1 // pred_check
      _
    $region11: #{tpu_custom_call.1} parent=1 // pred_check_branch
      %38 = sbr.rel (0) target = $region13
    $region12: #{tpu_custom_call.1} parent=1 // pred_region
      %s40 = ssub.s32 256, 256
      %41 = vsyncadd [#allocation4], %s40
      %s43 = sshll.u32 [#allocation5], 4
      %s44 = int_to_ptr.vmem [resolvable:$true] %s43
      %46 = dma.vmem_to_hbm [thread:$0]  %s44, 256, %s1, [#allocation4]
    $region13: #{tpu_custom_call.1} parent=1 // pred_fallthru
      _
    // Predicated region
    $region14: #{tpu_custom_call.1} parent=1 // pred_check
      _
    $region15: #{tpu_custom_call.1} parent=1 // pred_check_branch
      %48 = sbr.rel (0) target = $region17
    $region16: #{tpu_custom_call.1} parent=1 // pred_region
      %49 = dma.done [#allocation4], 256
    $region17: #{tpu_custom_call.1} parent=1 // pred_fallthru
      _
    %50 = vsyncpa [#allocation3], 1
    %51 = vsyncpa [#allocation4], 1

</llo_original>
